<compile_context>
chip_gen: v7x
topology: tpu7x:2x2x1
jax: 0.10.0
libtpu: 0.0.40
codegen_flags: <defaults>
</compile_context>

<pallas_src>
import jax
import jax.numpy as jnp
from jax.experimental import pallas as pl
from jax.experimental.pallas import tpu as pltpu


EMB_DIM = 300
HID_DIM = 150
OUT_DIM = 1


def _round_up(x, m):
    return ((x + m - 1) // m) * m


def _baseline_kernel(ids_ref, emb_ref, w1_ref, b1_ref, w2_ref, b2_ref,
                     w3_ref, b3_ref, o_ref):
    TB, S = ids_ref.shape
    V = emb_ref.shape[0]
    inv_s = jnp.float32(1.0 / S)

    # ---- Fused, pre-scaled token histogram: counts[b, v] = #{s: ids[b,s]==v}/S
    ids = ids_ref[...]                                           # (TB, S) int32
    iota_v = jax.lax.broadcasted_iota(jnp.int32, (TB, V), 1)     # (TB, V)
    counts = jnp.zeros((TB, V), jnp.float32)
    for s in range(S):                                           # static unroll (S small)
        counts = counts + jnp.where(ids[:, s:s + 1] == iota_v, inv_s, 0.0)

    # mean(emb(x), axis=1) == counts @ emb_table (1/S already folded in) -> MXU.
    h1 = jnp.dot(counts, emb_ref[...],
                 preferred_element_type=jnp.float32)             # (TB, 300)

    h2 = jnp.maximum(
        jnp.dot(h1, w1_ref[...], preferred_element_type=jnp.float32)
        + b1_ref[...], 0.0)                                      # (TB, 150)

    h3 = jnp.maximum(
        jnp.dot(h2, w2_ref[...], preferred_element_type=jnp.float32)
        + b2_ref[...], 0.0)                                      # (TB, 150)

    # fc3 (150 -> 1): VPU broadcast-multiply + lane reduction; write the result
    # lane-dense as a (1, 1, TB) row (single unmasked store per vreg).
    out_vec = jnp.sum(h3 * w3_ref[...], axis=-1)                 # (TB,)
    o_ref[...] = (out_vec[None, None, :] + b3_ref[...]).astype(o_ref.dtype)


def baseline_forward(x_ids, emb_table, w1, b1, w2, b2, w3_row, b3, *,
                     batch_tile=512):
    """x_ids: (B, S) int token ids; returns (B, 1) float32."""
    B, S = x_ids.shape
    V, D = emb_table.shape
    H = w1.shape[1]

    # Batch tile: large (default 512, sweep 512-1024) to amortize per-step
    # overhead, but capped so the grid has >= 2 steps whenever B allows it
    # (so the ("parallel",) batch axis can feed both v7x TensorCores).
    B8 = _round_up(max(B, 1), 8)
    min_tiles = 2 if B8 >= 16 else 1
    TB = min(batch_tile, _round_up(-(-B8 // min_tiles), 8))
    TB = max(TB, 8)
    B_pad = _round_up(B, TB)
    n_tiles = B_pad // TB

    ids = x_ids.astype(jnp.int32)
    if B_pad != B:
        # Padded rows use token id 0; their (garbage) outputs are sliced off.
        ids = jnp.pad(ids, ((0, B_pad - B), (0, 0)))

    def const_spec(shape):
        return pl.BlockSpec(shape, lambda i: tuple(0 for _ in shape))

    # VMEM budget: resident weights/table (x2 buffers from the const specs),
    # double-buffered ids/out tiles, in-flight activations, plus headroom.
    weight_bytes = 4 * (V * D + D * H + H + H * H + H + H + OUT_DIM)
    io_tile_bytes = 2 * (TB * S * 4 + TB * 4)
    act_bytes = 4 * TB * (2 * V + D + 2 * H + 2)
    vmem_bytes = int(2 * weight_bytes + io_tile_bytes + act_bytes + (4 << 20))

    flops = 2 * B_pad * (S * V + V * D + D * H + H * H + H)
    bytes_accessed = 4 * (B_pad * S + V * D + D * H + H * H + 3 * H + OUT_DIM
                          + B_pad)

    out = pl.pallas_call(
        _baseline_kernel,
        out_shape=jax.ShapeDtypeStruct((n_tiles, 1, TB), jnp.float32),
        grid=(n_tiles,),
        in_specs=[
            pl.BlockSpec((TB, S), lambda i: (i, 0)),   # token-id tile (batch grid)
            const_spec((V, D)),                        # embedding table (resident)
            const_spec(w1.shape), const_spec(b1.shape),
            const_spec(w2.shape), const_spec(b2.shape),
            const_spec(w3_row.shape), const_spec(b3.shape),
        ],
        out_specs=pl.BlockSpec((1, 1, TB), lambda i: (i, 0, 0)),
        compiler_params=pltpu.CompilerParams(
            dimension_semantics=("parallel",),
            vmem_limit_bytes=vmem_bytes),
        cost_estimate=pl.CostEstimate(
            flops=flops, transcendentals=0, bytes_accessed=bytes_accessed),
    )(ids, emb_table, w1, b1, w2, b2, w3_row, b3)

    # (n_tiles, 1, TB) row-major -> (B_pad, 1); drop padded rows.
    return out.reshape(B_pad, 1)[:B]


def init_params(key, vocab=32):
    """Deterministic synthetic parameters matching the module's shapes."""
    ks = jax.random.split(key, 7)
    emb = jax.random.normal(ks[0], (vocab, EMB_DIM), jnp.float32) * 0.1
    # Weights stored as (in_features, out_features) so the kernel does h @ W + b.
    w1 = jax.random.normal(ks[1], (EMB_DIM, HID_DIM), jnp.float32) * 0.05
    b1 = jax.random.normal(ks[2], (1, HID_DIM), jnp.float32) * 0.01
    w2 = jax.random.normal(ks[3], (HID_DIM, HID_DIM), jnp.float32) * 0.05
    b2 = jax.random.normal(ks[4], (1, HID_DIM), jnp.float32) * 0.01
    # fc3 weight kept as a (1, 150) row for the in-kernel lane reduction.
    w3_row = jax.random.normal(ks[5], (1, HID_DIM), jnp.float32) * 0.05
    b3 = jax.random.normal(ks[6], (1, OUT_DIM), jnp.float32) * 0.01
    return emb, w1, b1, w2, b2, w3_row, b3


def reference_forward(x_ids, emb, w1, b1, w2, b2, w3_row, b3):
    h1 = jnp.mean(jnp.take(emb, x_ids, axis=0), axis=1)
    h2 = jnp.maximum(h1 @ w1 + b1, 0.0)
    h3 = jnp.maximum(h2 @ w2 + b2, 0.0)
    return h3 @ w3_row.T + b3


if __name__ == "__main__":
    key = jax.random.PRNGKey(0)
    k_param, k_ids = jax.random.split(key)

    VOCAB, B, S = 32, 2, 8
    emb, w1, b1, w2, b2, w3_row, b3 = init_params(k_param, vocab=VOCAB)
    x_ids = jax.random.randint(k_ids, (B, S), 0, VOCAB, dtype=jnp.int32)

    out = baseline_forward(x_ids, emb, w1, b1, w2, b2, w3_row, b3)
    out = jax.block_until_ready(out)

    ref = reference_forward(x_ids, emb, w1, b1, w2, b2, w3_row, b3)
    assert out.shape == (B, OUT_DIM)
    assert jnp.allclose(out, ref, atol=1e-4, rtol=1e-4)

    print("KERNEL_OK")
</pallas_src>

<mosaic_0001>
module attributes {stable_mosaic.version = 11 : i64} {
  func.func @_baseline_kernel(%arg0: i32, %arg1: memref<8x8xi32, #tpu.memory_space<vmem>>, %arg2: memref<32x300xf32, #tpu.memory_space<vmem>>, %arg3: memref<300x150xf32, #tpu.memory_space<vmem>>, %arg4: memref<1x150xf32, #tpu.memory_space<vmem>>, %arg5: memref<150x150xf32, #tpu.memory_space<vmem>>, %arg6: memref<1x150xf32, #tpu.memory_space<vmem>>, %arg7: memref<1x150xf32, #tpu.memory_space<vmem>>, %arg8: memref<1x1xf32, #tpu.memory_space<vmem>>, %arg9: memref<1x1x8xf32, #tpu.memory_space<vmem>>) attributes {dimension_semantics = [#tpu.dimension_semantics<parallel>], iteration_bounds = array<i64: 1>, scalar_prefetch = 0 : i64, scratch_operands = 0 : i64, tpu.core_type = #tpu.core_type<tc>, window_params = [{transform_indices = @transform_0, window_bounds = array<i64: 8, 8>}, {pipeline_mode = #tpu.pipeline_mode<synchronous>, transform_indices = @transform_1, window_bounds = array<i64: 32, 300>}, {pipeline_mode = #tpu.pipeline_mode<synchronous>, transform_indices = @transform_2, window_bounds = array<i64: 300, 150>}, {pipeline_mode = #tpu.pipeline_mode<synchronous>, transform_indices = @transform_3, window_bounds = array<i64: 1, 150>}, {pipeline_mode = #tpu.pipeline_mode<synchronous>, transform_indices = @transform_4, window_bounds = array<i64: 150, 150>}, {pipeline_mode = #tpu.pipeline_mode<synchronous>, transform_indices = @transform_5, window_bounds = array<i64: 1, 150>}, {pipeline_mode = #tpu.pipeline_mode<synchronous>, transform_indices = @transform_6, window_bounds = array<i64: 1, 150>}, {pipeline_mode = #tpu.pipeline_mode<synchronous>, transform_indices = @transform_7, window_bounds = array<i64: 1, 1>}, {transform_indices = @transform_8, window_bounds = array<i64: 1, 1, 8>}]} {
    %c0 = arith.constant 0 : index
    %c0_0 = arith.constant 0 : index
    %0 = vector.load %arg1[%c0, %c0_0] : memref<8x8xi32, #tpu.memory_space<vmem>>, vector<8x8xi32>
    %1 = tpu.iota {dimensions = array<i32: 1>} : vector<8x32xi32>
    %cst = arith.constant 0.000000e+00 : f32
    %2 = vector.broadcast %cst : f32 to vector<8x32xf32>
    %3 = vector.extract_strided_slice %0 {offsets = [0, 0], sizes = [8, 1], strides = [1, 1]} : vector<8x8xi32> to vector<8x1xi32>
    %4 = vector.broadcast %3 : vector<8x1xi32> to vector<8x32xi32>
    %5 = arith.cmpi eq, %4, %1 : vector<8x32xi32>
    %cst_1 = arith.constant 1.250000e-01 : f32
    %cst_2 = arith.constant 0.000000e+00 : f32
    %6 = vector.broadcast %cst_1 : f32 to vector<8x32xf32>
    %7 = vector.broadcast %cst_2 : f32 to vector<8x32xf32>
    %8 = arith.select %5, %6, %7 : vector<8x32xi1>, vector<8x32xf32>
    %9 = arith.addf %2, %8 : vector<8x32xf32>
    %10 = vector.extract_strided_slice %0 {offsets = [0, 1], sizes = [8, 1], strides = [1, 1]} : vector<8x8xi32> to vector<8x1xi32>
    %11 = vector.broadcast %10 : vector<8x1xi32> to vector<8x32xi32>
    %12 = arith.cmpi eq, %11, %1 : vector<8x32xi32>
    %cst_3 = arith.constant 1.250000e-01 : f32
    %cst_4 = arith.constant 0.000000e+00 : f32
    %13 = vector.broadcast %cst_3 : f32 to vector<8x32xf32>
    %14 = vector.broadcast %cst_4 : f32 to vector<8x32xf32>
    %15 = arith.select %12, %13, %14 : vector<8x32xi1>, vector<8x32xf32>
    %16 = arith.addf %9, %15 : vector<8x32xf32>
    %17 = vector.extract_strided_slice %0 {offsets = [0, 2], sizes = [8, 1], strides = [1, 1]} : vector<8x8xi32> to vector<8x1xi32>
    %18 = vector.broadcast %17 : vector<8x1xi32> to vector<8x32xi32>
    %19 = arith.cmpi eq, %18, %1 : vector<8x32xi32>
    %cst_5 = arith.constant 1.250000e-01 : f32
    %cst_6 = arith.constant 0.000000e+00 : f32
    %20 = vector.broadcast %cst_5 : f32 to vector<8x32xf32>
    %21 = vector.broadcast %cst_6 : f32 to vector<8x32xf32>
    %22 = arith.select %19, %20, %21 : vector<8x32xi1>, vector<8x32xf32>
    %23 = arith.addf %16, %22 : vector<8x32xf32>
    %24 = vector.extract_strided_slice %0 {offsets = [0, 3], sizes = [8, 1], strides = [1, 1]} : vector<8x8xi32> to vector<8x1xi32>
    %25 = vector.broadcast %24 : vector<8x1xi32> to vector<8x32xi32>
    %26 = arith.cmpi eq, %25, %1 : vector<8x32xi32>
    %cst_7 = arith.constant 1.250000e-01 : f32
    %cst_8 = arith.constant 0.000000e+00 : f32
    %27 = vector.broadcast %cst_7 : f32 to vector<8x32xf32>
    %28 = vector.broadcast %cst_8 : f32 to vector<8x32xf32>
    %29 = arith.select %26, %27, %28 : vector<8x32xi1>, vector<8x32xf32>
    %30 = arith.addf %23, %29 : vector<8x32xf32>
    %31 = vector.extract_strided_slice %0 {offsets = [0, 4], sizes = [8, 1], strides = [1, 1]} : vector<8x8xi32> to vector<8x1xi32>
    %32 = vector.broadcast %31 : vector<8x1xi32> to vector<8x32xi32>
    %33 = arith.cmpi eq, %32, %1 : vector<8x32xi32>
    %cst_9 = arith.constant 1.250000e-01 : f32
    %cst_10 = arith.constant 0.000000e+00 : f32
    %34 = vector.broadcast %cst_9 : f32 to vector<8x32xf32>
    %35 = vector.broadcast %cst_10 : f32 to vector<8x32xf32>
    %36 = arith.select %33, %34, %35 : vector<8x32xi1>, vector<8x32xf32>
    %37 = arith.addf %30, %36 : vector<8x32xf32>
    %38 = vector.extract_strided_slice %0 {offsets = [0, 5], sizes = [8, 1], strides = [1, 1]} : vector<8x8xi32> to vector<8x1xi32>
    %39 = vector.broadcast %38 : vector<8x1xi32> to vector<8x32xi32>
    %40 = arith.cmpi eq, %39, %1 : vector<8x32xi32>
    %cst_11 = arith.constant 1.250000e-01 : f32
    %cst_12 = arith.constant 0.000000e+00 : f32
    %41 = vector.broadcast %cst_11 : f32 to vector<8x32xf32>
    %42 = vector.broadcast %cst_12 : f32 to vector<8x32xf32>
    %43 = arith.select %40, %41, %42 : vector<8x32xi1>, vector<8x32xf32>
    %44 = arith.addf %37, %43 : vector<8x32xf32>
    %45 = vector.extract_strided_slice %0 {offsets = [0, 6], sizes = [8, 1], strides = [1, 1]} : vector<8x8xi32> to vector<8x1xi32>
    %46 = vector.broadcast %45 : vector<8x1xi32> to vector<8x32xi32>
    %47 = arith.cmpi eq, %46, %1 : vector<8x32xi32>
    %cst_13 = arith.constant 1.250000e-01 : f32
    %cst_14 = arith.constant 0.000000e+00 : f32
    %48 = vector.broadcast %cst_13 : f32 to vector<8x32xf32>
    %49 = vector.broadcast %cst_14 : f32 to vector<8x32xf32>
    %50 = arith.select %47, %48, %49 : vector<8x32xi1>, vector<8x32xf32>
    %51 = arith.addf %44, %50 : vector<8x32xf32>
    %52 = vector.extract_strided_slice %0 {offsets = [0, 7], sizes = [8, 1], strides = [1, 1]} : vector<8x8xi32> to vector<8x1xi32>
    %53 = vector.broadcast %52 : vector<8x1xi32> to vector<8x32xi32>
    %54 = arith.cmpi eq, %53, %1 : vector<8x32xi32>
    %cst_15 = arith.constant 1.250000e-01 : f32
    %cst_16 = arith.constant 0.000000e+00 : f32
    %55 = vector.broadcast %cst_15 : f32 to vector<8x32xf32>
    %56 = vector.broadcast %cst_16 : f32 to vector<8x32xf32>
    %57 = arith.select %54, %55, %56 : vector<8x32xi1>, vector<8x32xf32>
    %58 = arith.addf %51, %57 : vector<8x32xf32>
    %c0_17 = arith.constant 0 : index
    %c0_18 = arith.constant 0 : index
    %59 = vector.load %arg2[%c0_17, %c0_18] : memref<32x300xf32, #tpu.memory_space<vmem>>, vector<32x300xf32>
    %cst_19 = arith.constant dense<0.000000e+00> : vector<8x300xf32>
    %60 = tpu.matmul %58, %59, %cst_19 {dimension_numbers = #tpu.dot_dimension_numbers<[1], [0], [0], [1], [0, 0, 1, 1], [], []>} : vector<8x32xf32>, vector<32x300xf32>, vector<8x300xf32> -> vector<8x300xf32>
    %c0_20 = arith.constant 0 : index
    %c0_21 = arith.constant 0 : index
    %61 = vector.load %arg3[%c0_20, %c0_21] : memref<300x150xf32, #tpu.memory_space<vmem>>, vector<300x150xf32>
    %cst_22 = arith.constant dense<0.000000e+00> : vector<8x150xf32>
    %62 = tpu.matmul %60, %61, %cst_22 {dimension_numbers = #tpu.dot_dimension_numbers<[1], [0], [0], [1], [0, 0, 1, 1], [], []>} : vector<8x300xf32>, vector<300x150xf32>, vector<8x150xf32> -> vector<8x150xf32>
    %c0_23 = arith.constant 0 : index
    %c0_24 = arith.constant 0 : index
    %63 = vector.load %arg4[%c0_23, %c0_24] : memref<1x150xf32, #tpu.memory_space<vmem>>, vector<1x150xf32>
    %64 = vector.broadcast %63 : vector<1x150xf32> to vector<8x150xf32>
    %65 = arith.addf %62, %64 : vector<8x150xf32>
    %cst_25 = arith.constant 0.000000e+00 : f32
    %66 = vector.broadcast %cst_25 : f32 to vector<8x150xf32>
    %67 = arith.maximumf %65, %66 : vector<8x150xf32>
    %c0_26 = arith.constant 0 : index
    %c0_27 = arith.constant 0 : index
    %68 = vector.load %arg5[%c0_26, %c0_27] : memref<150x150xf32, #tpu.memory_space<vmem>>, vector<150x150xf32>
    %cst_28 = arith.constant dense<0.000000e+00> : vector<8x150xf32>
    %69 = tpu.matmul %67, %68, %cst_28 {dimension_numbers = #tpu.dot_dimension_numbers<[1], [0], [0], [1], [0, 0, 1, 1], [], []>} : vector<8x150xf32>, vector<150x150xf32>, vector<8x150xf32> -> vector<8x150xf32>
    %c0_29 = arith.constant 0 : index
    %c0_30 = arith.constant 0 : index
    %70 = vector.load %arg6[%c0_29, %c0_30] : memref<1x150xf32, #tpu.memory_space<vmem>>, vector<1x150xf32>
    %71 = vector.broadcast %70 : vector<1x150xf32> to vector<8x150xf32>
    %72 = arith.addf %69, %71 : vector<8x150xf32>
    %cst_31 = arith.constant 0.000000e+00 : f32
    %73 = vector.broadcast %cst_31 : f32 to vector<8x150xf32>
    %74 = arith.maximumf %72, %73 : vector<8x150xf32>
    %c0_32 = arith.constant 0 : index
    %c0_33 = arith.constant 0 : index
    %75 = vector.load %arg7[%c0_32, %c0_33] : memref<1x150xf32, #tpu.memory_space<vmem>>, vector<1x150xf32>
    %76 = vector.broadcast %75 : vector<1x150xf32> to vector<8x150xf32>
    %77 = arith.mulf %74, %76 : vector<8x150xf32>
    %cst_34 = arith.constant dense<0.000000e+00> : vector<8xf32>
    %78 = vector.multi_reduction <add>, %77, %cst_34 [1] : vector<8x150xf32> to vector<8xf32>
    %79 = vector.shape_cast %78 : vector<8xf32> to vector<1x1x8xf32>
    %c0_35 = arith.constant 0 : index
    %c0_36 = arith.constant 0 : index
    %80 = vector.load %arg8[%c0_35, %c0_36] : memref<1x1xf32, #tpu.memory_space<vmem>>, vector<1x1xf32>
    %81 = vector.shape_cast %80 : vector<1x1xf32> to vector<1x1x1xf32>
    %82 = vector.broadcast %81 : vector<1x1x1xf32> to vector<1x1x8xf32>
    %83 = arith.addf %79, %82 : vector<1x1x8xf32>
    %c0_37 = arith.constant 0 : index
    %c0_38 = arith.constant 0 : index
    %c0_39 = arith.constant 0 : index
    %84 = vector.load %arg9[%c0_37, %c0_38, %c0_39] : memref<1x1x8xf32, #tpu.memory_space<vmem>>, vector<1x1x8xf32>
    tpu.vector_store %arg9[%c0_37, %c0_38, %c0_39], %83 {strides = array<i32>} : memref<1x1x8xf32, #tpu.memory_space<vmem>>, vector<1x1x8xf32>,
    return
  }
  func.func @transform_0(%arg0: i32) -> (i32, i32) {
    %c0_i32 = arith.constant 0 : i32
    %c0_i32_0 = arith.constant 0 : i32
    return %arg0, %c0_i32 : i32, i32
  }
  func.func @transform_1(%arg0: i32) -> (i32, i32) {
    %c0_i32 = arith.constant 0 : i32
    %c0_i32_0 = arith.constant 0 : i32
    %c0_i32_1 = arith.constant 0 : i32
    return %c0_i32, %c0_i32_0 : i32, i32
  }
  func.func @transform_2(%arg0: i32) -> (i32, i32) {
    %c0_i32 = arith.constant 0 : i32
    %c0_i32_0 = arith.constant 0 : i32
    %c0_i32_1 = arith.constant 0 : i32
    return %c0_i32, %c0_i32_0 : i32, i32
  }
  func.func @transform_3(%arg0: i32) -> (i32, i32) {
    %c0_i32 = arith.constant 0 : i32
    %c0_i32_0 = arith.constant 0 : i32
    %c0_i32_1 = arith.constant 0 : i32
    return %c0_i32, %c0_i32_0 : i32, i32
  }
  func.func @transform_4(%arg0: i32) -> (i32, i32) {
    %c0_i32 = arith.constant 0 : i32
    %c0_i32_0 = arith.constant 0 : i32
    %c0_i32_1 = arith.constant 0 : i32
    return %c0_i32, %c0_i32_0 : i32, i32
  }
  func.func @transform_5(%arg0: i32) -> (i32, i32) {
    %c0_i32 = arith.constant 0 : i32
    %c0_i32_0 = arith.constant 0 : i32
    %c0_i32_1 = arith.constant 0 : i32
    return %c0_i32, %c0_i32_0 : i32, i32
  }
  func.func @transform_6(%arg0: i32) -> (i32, i32) {
    %c0_i32 = arith.constant 0 : i32
    %c0_i32_0 = arith.constant 0 : i32
    %c0_i32_1 = arith.constant 0 : i32
    return %c0_i32, %c0_i32_0 : i32, i32
  }
  func.func @transform_7(%arg0: i32) -> (i32, i32) {
    %c0_i32 = arith.constant 0 : i32
    %c0_i32_0 = arith.constant 0 : i32
    %c0_i32_1 = arith.constant 0 : i32
    return %c0_i32, %c0_i32_0 : i32, i32
  }
  func.func @transform_8(%arg0: i32) -> (i32, i32, i32) {
    %c0_i32 = arith.constant 0 : i32
    %c0_i32_0 = arith.constant 0 : i32
    %c0_i32_1 = arith.constant 0 : i32
    return %arg0, %c0_i32, %c0_i32_0 : i32, i32, i32
  }
}

</mosaic_0001>

<llo_original>
// kernel: tpu_custom_call.1
$region0: #{tpu_custom_call.1}
  #allocation0 [shape = 'u32[]', space=smem, size = 0x4, offset = 0x4, fixed_abs, tag = 'smem constant byte address 0x4 - core index']
  #allocation1 [shape = 'u32[144,128]{1,0:T(1,128)}', space=vmem, size = 0x12000, scoped, tag = 'internal scratch']
  #allocation2 [shape = 'f32[1,1]{1,0:T(1,128)S(1)}', space=vmem, size = 0x200, scoped, tag = 'scoped memory for tpu_custom_call.1']
  %s0 = inlined_call_operand.vmem [shape: s32[8,8], index: 0, kind: input, shape index: {}]
  %s1 = inlined_call_operand.vmem [shape: f32[32,300], index: 1, kind: input, shape index: {}]
  %s2 = inlined_call_operand.vmem [shape: f32[300,150], index: 2, kind: input, shape index: {}]
  %s3 = inlined_call_operand.vmem [shape: f32[1,150], index: 3, kind: input, shape index: {}]
  %s4 = inlined_call_operand.vmem [shape: f32[150,150], index: 4, kind: input, shape index: {}]
  %s5 = inlined_call_operand.vmem [shape: f32[1,150], index: 5, kind: input, shape index: {}]
  %s6 = inlined_call_operand.vmem [shape: f32[1,150], index: 6, kind: input, shape index: {}]
  %s7 = inlined_call_operand.<no memory space> [shape: f32[1,1], index: 7, kind: input, shape index: {}]
  %s8 = inlined_call_operand.hbm [shape: f32[1,1,8], index: 8, kind: output, shape index: {}]
  %s9 = sld [smem:[#allocation0]]
  $region42: #{tpu_custom_call.1} parent=0
    _
  %s11 = ssub.s32 1, %s9
  %s12 = scalar_select 0, %s11, %s9
  %v13 = vstv %s7
  %14 = vst [vmem:[#allocation2] sm:$0x1] %v13
  $region1: #{tpu_custom_call.1} parent=0
    #allocation3 [shape = 'u8[512]{0}', space=vmem, size = 0x400, scoped, tag = 'output window, operand 0, single buffered']
    #allocation4 [shape = 's32[1]{0}', space=sflag, size = 0x4, scoped, tag = 'scoped memory for tpu_custom_call.1']
    %15 = vsyncpa [#allocation4], 0
    // Predicated region
    $region2: #{tpu_custom_call.1} parent=1 // pred_check
      _
    $region3: #{tpu_custom_call.1} parent=1 // pred_check_branch
      %17 = sbr.rel (0) target = $region5
    $region4: #{tpu_custom_call.1} parent=1 // pred_region
      _
    $region5: #{tpu_custom_call.1} parent=1 // pred_fallthru
      _
    // Predicated region
    $region6: #{tpu_custom_call.1} parent=1 // pred_check
      _
    $region7: #{tpu_custom_call.1} parent=1 // pred_check_branch
      %19 = sbr.rel (0) target = $region9
    $region8: #{tpu_custom_call.1} parent=1 // pred_region
      _
    $region9: #{tpu_custom_call.1} parent=1 // pred_fallthru
      _
    // Predicated region
    $region10: #{tpu_custom_call.1} parent=1 // pred_check
      _
    $region11: #{tpu_custom_call.1} parent=1 // pred_check_branch
      %21 = sbr.rel (0) target = $region13
    $region12: #{tpu_custom_call.1} parent=1 // pred_region
      _
    $region13: #{tpu_custom_call.1} parent=1 // pred_fallthru
      _
    // Predicated region
    $region14: #{tpu_custom_call.1} parent=1 // pred_check
      _
    $region15: #{tpu_custom_call.1} parent=1 // pred_check_branch
      %23 = sbr.rel (0) target = $region17
    $region16: #{tpu_custom_call.1} parent=1 // pred_region
      _
    $region17: #{tpu_custom_call.1} parent=1 // pred_fallthru
      _
    // Predicated region
    $region18: #{tpu_custom_call.1} parent=1 // pred_check
      _
    $region19: #{tpu_custom_call.1} parent=1 // pred_check_branch
      %25 = sbr.rel (0) target = $region21
    $region20: #{tpu_custom_call.1} parent=1 // pred_region
      _
    $region21: #{tpu_custom_call.1} parent=1 // pred_fallthru
      _
    // Predicated region
    $region22: #{tpu_custom_call.1} parent=1 // pred_check
      _
    $region23: #{tpu_custom_call.1} parent=1 // pred_check_branch
      %27 = sbr.rel (0) target = $region25
    $region24: #{tpu_custom_call.1} parent=1 // pred_region
      _
    $region25: #{tpu_custom_call.1} parent=1 // pred_fallthru
      _
    // Predicated region
    $region26: #{tpu_custom_call.1} parent=1 // pred_check
      _
    $region27: #{tpu_custom_call.1} parent=1 // pred_check_branch
      %29 = sbr.rel (0) target = $region29
    $region28: #{tpu_custom_call.1} parent=1 // pred_region
      _
    $region29: #{tpu_custom_call.1} parent=1 // pred_fallthru
      _
    // Predicated region
    $region30: #{tpu_custom_call.1} parent=1 // pred_check
      _
    $region31: #{tpu_custom_call.1} parent=1 // pred_check_branch
      %31 = sbr.rel (0) target = $region33
    $region32: #{tpu_custom_call.1} parent=1 // pred_region
      _
    $region33: #{tpu_custom_call.1} parent=1 // pred_fallthru
      _
    %v32 = vld [vmem:[%s0] sm:$0xff]
    %v33 = vlaneseq
    %v34 = vand.u32 %v33, 127
    %35 = vset.pattern.permute.xlu0 0
    %36 = vperm.xlu0 %35, %v32
    %v37 = vpop.permute.xlu0 %36
    %vm38 = vcmp.eq.s32.totalorder %v37, %v34
    %v39 = vsel %vm38, 0.125, 0.0
    %v40 = vadd.f32 %v39, 0.0
    %41 = vset.pattern.permute.xlu0 1
    %42 = vperm.xlu0 %41, %v32
    %v43 = vpop.permute.xlu0 %42
    %vm44 = vcmp.eq.s32.totalorder %v43, %v34
    %v45 = vsel %vm44, 0.125, 0.0
    %v46 = vadd.f32 %v40, %v45
    %47 = vset.pattern.permute.xlu0 2
    %48 = vperm.xlu0 %47, %v32
    %v49 = vpop.permute.xlu0 %48
    %vm50 = vcmp.eq.s32.totalorder %v49, %v34
    %v51 = vsel %vm50, 0.125, 0.0
    %v52 = vadd.f32 %v46, %v51
    %53 = vset.pattern.permute.xlu0 3
    %54 = vperm.xlu0 %53, %v32
    %v55 = vpop.permute.xlu0 %54
    %vm56 = vcmp.eq.s32.totalorder %v55, %v34
    %v57 = vsel %vm56, 0.125, 0.0
    %v58 = vadd.f32 %v52, %v57
    %59 = vset.pattern.permute.xlu0 4
    %60 = vperm.xlu0 %59, %v32
    %v61 = vpop.permute.xlu0 %60
    %vm62 = vcmp.eq.s32.totalorder %v61, %v34
    %v63 = vsel %vm62, 0.125, 0.0
    %v64 = vadd.f32 %v58, %v63
    %65 = vset.pattern.permute.xlu0 5
    %66 = vperm.xlu0 %65, %v32
    %v67 = vpop.permute.xlu0 %66
    %vm68 = vcmp.eq.s32.totalorder %v67, %v34
    %v69 = vsel %vm68, 0.125, 0.0
    %v70 = vadd.f32 %v64, %v69
    %71 = vset.pattern.permute.xlu0 6
    %72 = vperm.xlu0 %71, %v32
    %v73 = vpop.permute.xlu0 %72
    %vm74 = vcmp.eq.s32.totalorder %v73, %v34
    %v75 = vsel %vm74, 0.125, 0.0
    %v76 = vadd.f32 %v70, %v75
    %77 = vset.pattern.permute.xlu0 7
    %78 = vperm.xlu0 %77, %v32
    %v79 = vpop.permute.xlu0 %78
    %vm80 = vcmp.eq.s32.totalorder %v79, %v34
    %v81 = vsel %vm80, 0.125, 0.0
    %v82 = vadd.f32 %v76, %v81
    %v83 = vld [vmem:[%s1] sm:$0xff]
    %v84 = vld [vmem:[%s1 + $0x8] sm:$0xff]
    %v85 = vld [vmem:[%s1 + $0x10] sm:$0xff]
    %v86 = vld [vmem:[%s1 + $0x18] sm:$0xff]
    %v87 = vld [vmem:[%s1 + $0x20] sm:$0xff]
    %v88 = vld [vmem:[%s1 + $0x28] sm:$0xff]
    %v89 = vld [vmem:[%s1 + $0x30] sm:$0xff]
    %v90 = vld [vmem:[%s1 + $0x38] sm:$0xff]
    %v91 = vld [vmem:[%s1 + $0x40] sm:$0xff]
    %v92 = vld [vmem:[%s1 + $0x48] sm:$0xff]
    %v93 = vld [vmem:[%s1 + $0x50] sm:$0xff]
    %v94 = vld [vmem:[%s1 + $0x58] sm:$0xff]
    %vm95 = vcmask 261120
    %v97 = vsel %vm95, %v82, 0
    %99 = vmatprep.subr.mxu0 %v84
    %100 = vmatpush1.msra.mxu0 %v83
    %101 = vmatprep.subr.mxu0 %v87
    %102 = vmatpush1.msra.mxu0 %v86
    %103 = vmatprep.subr.mxu0 %v90
    %104 = vmatpush1.msra.mxu0 %v89
    %105 = vmatprep.subr.mxu0 %v93
    %106 = vmatpush1.msra.mxu0 %v92
    %107 = vmatprep.subr.mxu0 0.0
    %108 = vmatpush1.msra.mxu0 0.0
    %109 = vmatprep.subr.mxu0 0.0
    %110 = vmatpush1.msra.mxu0 0.0
    %111 = vmatprep.subr.mxu0 0.0
    %112 = vmatpush1.msra.mxu0 0.0
    %113 = vmatprep.subr.mxu0 0.0
    %114 = vmatpush1.msra.mxu0 0.0
    %115 = vmatprep.subr.mxu0 0.0
    %116 = vmatpush1.msra.mxu0 0.0
    %117 = vmatprep.subr.mxu0 0.0
    %118 = vmatpush1.msra.mxu0 0.0
    %119 = vmatprep.subr.mxu0 0.0
    %120 = vmatpush1.msra.mxu0 0.0
    %121 = vmatprep.subr.mxu0 0.0
    %122 = vmatpush1.msra.mxu0 0.0
    %123 = vmatprep.subr.mxu0 0.0
    %124 = vmatpush1.msra.mxu0 0.0
    %125 = vmatprep.subr.mxu0 0.0
    %126 = vmatpush1.msra.mxu0 0.0
    %127 = vmatprep.subr.mxu0 0.0
    %128 = vmatpush1.msra.mxu0 0.0
    %129 = vmatprep.subr.mxu0 0.0
    %130 = vmatpush1.msra.mxu0 0.0
    %131 = vmatprep.subr.mxu0 0.0
    %132 = vmatpush1.msra.mxu0 0.0
    %133 = vmatprep.subr.mxu0 0.0
    %134 = vmatpush1.msra.mxu0 0.0
    %135 = vmatprep.subr.mxu0 0.0
    %136 = vmatpush1.msra.mxu0 0.0
    %137 = vmatprep.subr.mxu0 0.0
    %138 = vmatpush1.msra.mxu0 0.0
    %139 = vmatprep.subr.mxu0 0.0
    %140 = vmatpush1.msra.mxu0 0.0
    %141 = vmatprep.subr.mxu0 0.0
    %142 = vmatpush1.msra.mxu0 0.0
    %143 = vmatprep.subr.mxu0 0.0
    %144 = vmatpush1.msra.mxu0 0.0
    %145 = vmatprep.subr.mxu0 0.0
    %146 = vmatpush1.msra.mxu0 0.0
    %147 = vmatprep.subr.mxu0 0.0
    %148 = vmatpush1.msra.mxu0 0.0
    %149 = vmatprep.subr.mxu0 0.0
    %150 = vmatpush1.msra.mxu0 0.0
    %151 = vmatprep.subr.mxu0 0.0
    %152 = vmatpush1.msra.mxu0 0.0
    %153 = vmatprep.subr.mxu0 0.0
    %154 = vmatpush1.msra.mxu0 0.0
    %155 = vmatprep.subr.mxu0 0.0
    %156 = vmatpush1.msra.mxu0 0.0
    %157 = vmatprep.subr.mxu0 0.0
    %158 = vmatpush1.msra.mxu0 0.0
    %159 = vmatprep.subr.mxu0 0.0
    %160 = vmatpush1.msra.mxu0 0.0
    %161 = vmatprep.subr.mxu0 0.0
    %162 = vmatpush1.msra.mxu0 0.0
    %163 = vmatprep.mubr.f32.mxu0 0.0
    %164 = vmatmul.mubr.f32.gmra.mrb[0].mxu0 %v97
    %v165 = vpop.f32.mrb[0].mxu0
    %v166 = vadd.f32 0.0, %v165
    %v167 = vpop.f32.mrb[0].mxu0
    %v168 = vadd.f32 0.0, %v167
    %169 = vdwg.mxu0
    %170 = vmatprep.subr.mxu0 0.0
    %171 = vmatpush1.msra.mxu0 %v85
    %172 = vmatprep.subr.mxu0 0.0
    %173 = vmatpush1.msra.mxu0 %v88
    %174 = vmatprep.subr.mxu0 0.0
    %175 = vmatpush1.msra.mxu0 %v91
    %176 = vmatprep.subr.mxu0 0.0
    %177 = vmatpush1.msra.mxu0 %v94
    %178 = vmatprep.subr.mxu0 0.0
    %179 = vmatpush1.msra.mxu0 0.0
    %180 = vmatprep.subr.mxu0 0.0
    %181 = vmatpush1.msra.mxu0 0.0
    %182 = vmatprep.subr.mxu0 0.0
    %183 = vmatpush1.msra.mxu0 0.0
    %184 = vmatprep.subr.mxu0 0.0
    %185 = vmatpush1.msra.mxu0 0.0
    %186 = vmatprep.subr.mxu0 0.0
    %187 = vmatpush1.msra.mxu0 0.0
    %188 = vmatprep.subr.mxu0 0.0
    %189 = vmatpush1.msra.mxu0 0.0
    %190 = vmatprep.subr.mxu0 0.0
    %191 = vmatpush1.msra.mxu0 0.0
    %192 = vmatprep.subr.mxu0 0.0
    %193 = vmatpush1.msra.mxu0 0.0
    %194 = vmatprep.subr.mxu0 0.0
    %195 = vmatpush1.msra.mxu0 0.0
    %196 = vmatprep.subr.mxu0 0.0
    %197 = vmatpush1.msra.mxu0 0.0
    %198 = vmatprep.subr.mxu0 0.0
    %199 = vmatpush1.msra.mxu0 0.0
    %200 = vmatprep.subr.mxu0 0.0
    %201 = vmatpush1.msra.mxu0 0.0
    %202 = vmatprep.subr.mxu0 0.0
    %203 = vmatpush1.msra.mxu0 0.0
    %204 = vmatprep.subr.mxu0 0.0
    %205 = vmatpush1.msra.mxu0 0.0
    %206 = vmatprep.subr.mxu0 0.0
    %207 = vmatpush1.msra.mxu0 0.0
    %208 = vmatprep.subr.mxu0 0.0
    %209 = vmatpush1.msra.mxu0 0.0
    %210 = vmatprep.subr.mxu0 0.0
    %211 = vmatpush1.msra.mxu0 0.0
    %212 = vmatprep.subr.mxu0 0.0
    %213 = vmatpush1.msra.mxu0 0.0
    %214 = vmatprep.subr.mxu0 0.0
    %215 = vmatpush1.msra.mxu0 0.0
    %216 = vmatprep.subr.mxu0 0.0
    %217 = vmatpush1.msra.mxu0 0.0
    %218 = vmatprep.subr.mxu0 0.0
    %219 = vmatpush1.msra.mxu0 0.0
    %220 = vmatprep.subr.mxu0 0.0
    %221 = vmatpush1.msra.mxu0 0.0
    %222 = vmatprep.subr.mxu0 0.0
    %223 = vmatpush1.msra.mxu0 0.0
    %224 = vmatprep.subr.mxu0 0.0
    %225 = vmatpush1.msra.mxu0 0.0
    %226 = vmatprep.subr.mxu0 0.0
    %227 = vmatpush1.msra.mxu0 0.0
    %228 = vmatprep.subr.mxu0 0.0
    %229 = vmatpush1.msra.mxu0 0.0
    %230 = vmatprep.subr.mxu0 0.0
    %231 = vmatpush1.msra.mxu0 0.0
    %232 = vmatprep.subr.mxu0 0.0
    %233 = vmatpush1.msra.mxu0 0.0
    %234 = vmatprep.mubr.f32.mxu0 0.0
    %235 = vmatmul.mubr.f32.gmra.mrb[0].mxu0 %v97
    %v236 = vpop.f32.mrb[0].mxu0
    %v237 = vadd.f32 0.0, %v236
    %v238 = vpop.f32.mrb[0].mxu0
    %239 = vdwg.mxu0
    %v240 = vld [vmem:[%s2] sm:$0xff]
    %v241 = vld [vmem:[%s2 + $0x8] sm:$0xff]
    %v242 = vld [vmem:[%s2 + $0x10] sm:$0xff]
    %v243 = vld [vmem:[%s2 + $0x18] sm:$0xff]
    %v244 = vld [vmem:[%s2 + $0x20] sm:$0xff]
    %v245 = vld [vmem:[%s2 + $0x28] sm:$0xff]
    %v246 = vld [vmem:[%s2 + $0x30] sm:$0xff]
    %v247 = vld [vmem:[%s2 + $0x38] sm:$0xff]
    %v248 = vld [vmem:[%s2 + $0x40] sm:$0xff]
    %v249 = vld [vmem:[%s2 + $0x48] sm:$0xff]
    %v250 = vld [vmem:[%s2 + $0x50] sm:$0xff]
    %v251 = vld [vmem:[%s2 + $0x58] sm:$0xff]
    %v252 = vld [vmem:[%s2 + $0x60] sm:$0xff]
    %v253 = vld [vmem:[%s2 + $0x68] sm:$0xff]
    %v254 = vld [vmem:[%s2 + $0x70] sm:$0xff]
    %v255 = vld [vmem:[%s2 + $0x78] sm:$0xff]
    %v256 = vld [vmem:[%s2 + $0x80] sm:$0xff]
    %v257 = vld [vmem:[%s2 + $0x88] sm:$0xff]
    %v258 = vld [vmem:[%s2 + $0x90] sm:$0xff]
    %v259 = vld [vmem:[%s2 + $0x98] sm:$0xff]
    %v260 = vld [vmem:[%s2 + $0xa0] sm:$0xff]
    %v261 = vld [vmem:[%s2 + $0xa8] sm:$0xff]
    %v262 = vld [vmem:[%s2 + $0xb0] sm:$0xff]
    %v263 = vld [vmem:[%s2 + $0xb8] sm:$0xff]
    %v264 = vld [vmem:[%s2 + $0xc0] sm:$0xff]
    %v265 = vld [vmem:[%s2 + $0xc8] sm:$0xff]
    %v266 = vld [vmem:[%s2 + $0xd0] sm:$0xff]
    %v267 = vld [vmem:[%s2 + $0xd8] sm:$0xff]
    %v268 = vld [vmem:[%s2 + $0xe0] sm:$0xff]
    %v269 = vld [vmem:[%s2 + $0xe8] sm:$0xff]
    %v270 = vld [vmem:[%s2 + $0xf0] sm:$0xff]
    %v271 = vld [vmem:[%s2 + $0xf8] sm:$0xff]
    %v272 = vld [vmem:[%s2 + $0x100] sm:$0xff]
    %v273 = vld [vmem:[%s2 + $0x108] sm:$0xff]
    %v274 = vld [vmem:[%s2 + $0x110] sm:$0xff]
    %v275 = vld [vmem:[%s2 + $0x118] sm:$0xff]
    %v276 = vld [vmem:[%s2 + $0x120] sm:$0xff]
    %v277 = vld [vmem:[%s2 + $0x128] sm:$0xff]
    %v278 = vld [vmem:[%s2 + $0x130] sm:$0xff]
    %v279 = vld [vmem:[%s2 + $0x138] sm:$0xff]
    %v280 = vld [vmem:[%s2 + $0x140] sm:$0xff]
    %v281 = vld [vmem:[%s2 + $0x148] sm:$0xff]
    %v282 = vld [vmem:[%s2 + $0x150] sm:$0xff]
    %v283 = vld [vmem:[%s2 + $0x158] sm:$0xff]
    %v284 = vld [vmem:[%s2 + $0x160] sm:$0xff]
    %v285 = vld [vmem:[%s2 + $0x168] sm:$0xff]
    %v286 = vld [vmem:[%s2 + $0x170] sm:$0xff]
    %v287 = vld [vmem:[%s2 + $0x178] sm:$0xff]
    %v288 = vld [vmem:[%s2 + $0x180] sm:$0xff]
    %v289 = vld [vmem:[%s2 + $0x188] sm:$0xff]
    %v290 = vld [vmem:[%s2 + $0x190] sm:$0xff]
    %v291 = vld [vmem:[%s2 + $0x198] sm:$0xff]
    %v292 = vld [vmem:[%s2 + $0x1a0] sm:$0xff]
    %v293 = vld [vmem:[%s2 + $0x1a8] sm:$0xff]
    %v294 = vld [vmem:[%s2 + $0x1b0] sm:$0xff]
    %v295 = vld [vmem:[%s2 + $0x1b8] sm:$0xff]
    %v296 = vld [vmem:[%s2 + $0x1c0] sm:$0xff]
    %v297 = vld [vmem:[%s2 + $0x1c8] sm:$0xff]
    %v298 = vld [vmem:[%s2 + $0x1d0] sm:$0xff]
    %v299 = vld [vmem:[%s2 + $0x1d8] sm:$0xff]
    %v300 = vld [vmem:[%s2 + $0x1e0] sm:$0xff]
    %v301 = vld [vmem:[%s2 + $0x1e8] sm:$0xff]
    %v302 = vld [vmem:[%s2 + $0x1f0] sm:$0xff]
    %v303 = vld [vmem:[%s2 + $0x1f8] sm:$0xff]
    %v304 = vld [vmem:[%s2 + $0x200] sm:$0xff]
    %v305 = vld [vmem:[%s2 + $0x208] sm:$0xff]
    %v306 = vld [vmem:[%s2 + $0x210] sm:$0xff]
    %v307 = vld [vmem:[%s2 + $0x218] sm:$0xff]
    %v308 = vld [vmem:[%s2 + $0x220] sm:$0xff]
    %v309 = vld [vmem:[%s2 + $0x228] sm:$0xff]
    %v310 = vld [vmem:[%s2 + $0x230] sm:$0xff]
    %v311 = vld [vmem:[%s2 + $0x238] sm:$0xff]
    %v312 = vld [vmem:[%s2 + $0x240] sm:$0xff]
    %v313 = vld [vmem:[%s2 + $0x248] sm:$0xff]
    %v314 = vld [vmem:[%s2 + $0x250] sm:$0xf]
    %v315 = vld [vmem:[%s2 + $0x258] sm:$0xf]
    %v316 = vld [vmem:[%s3] sm:$0x3]
    %v318 = vlaneseq
    %v319 = vshrl.u32 %v318, 7
    %v320 = vsub.s32 0, %v319
    %v321 = vrot.slane %v316, %v320
    %v322 = vlaneseq
    %v323 = vshrl.u32 %v322, 7
    %v324 = vsub.s32 1, %v323
    %v325 = vrot.slane %v316, %v324
    %vm328 = vcmask 359424
    %v330 = vsel %vm328, %v237, 0
    %vm332 = vcmask 1043456
    %v334 = vsel %vm332, %v314, 0
    %v337 = vsel %vm332, %v315, 0
    %339 = vmatprep.subr.mxu0 %v241
    %340 = vmatpush1.msra.mxu0 %v240
    %341 = vmatprep.subr.mxu0 %v243
    %342 = vmatpush1.msra.mxu0 %v242
    %343 = vmatprep.subr.mxu0 %v245
    %344 = vmatpush1.msra.mxu0 %v244
    %345 = vmatprep.subr.mxu0 %v247
    %346 = vmatpush1.msra.mxu0 %v246
    %347 = vmatprep.subr.mxu0 %v249
    %348 = vmatpush1.msra.mxu0 %v248
    %349 = vmatprep.subr.mxu0 %v251
    %350 = vmatpush1.msra.mxu0 %v250
    %351 = vmatprep.subr.mxu0 %v253
    %352 = vmatpush1.msra.mxu0 %v252
    %353 = vmatprep.subr.mxu0 %v255
    %354 = vmatpush1.msra.mxu0 %v254
    %355 = vmatprep.subr.mxu0 %v257
    %356 = vmatpush1.msra.mxu0 %v256
    %357 = vmatprep.subr.mxu0 %v259
    %358 = vmatpush1.msra.mxu0 %v258
    %359 = vmatprep.subr.mxu0 %v261
    %360 = vmatpush1.msra.mxu0 %v260
    %361 = vmatprep.subr.mxu0 %v263
    %362 = vmatpush1.msra.mxu0 %v262
    %363 = vmatprep.subr.mxu0 %v265
    %364 = vmatpush1.msra.mxu0 %v264
    %365 = vmatprep.subr.mxu0 %v267
    %366 = vmatpush1.msra.mxu0 %v266
    %367 = vmatprep.subr.mxu0 %v269
    %368 = vmatpush1.msra.mxu0 %v268
    %369 = vmatprep.subr.mxu0 %v271
    %370 = vmatpush1.msra.mxu0 %v270
    %371 = vmatprep.subr.mxu0 %v273
    %372 = vmatpush1.msra.mxu0 %v272
    %373 = vmatprep.subr.mxu0 %v275
    %374 = vmatpush1.msra.mxu0 %v274
    %375 = vmatprep.subr.mxu0 %v277
    %376 = vmatpush1.msra.mxu0 %v276
    %377 = vmatprep.subr.mxu0 %v279
    %378 = vmatpush1.msra.mxu0 %v278
    %379 = vmatprep.subr.mxu0 %v281
    %380 = vmatpush1.msra.mxu0 %v280
    %381 = vmatprep.subr.mxu0 %v283
    %382 = vmatpush1.msra.mxu0 %v282
    %383 = vmatprep.subr.mxu0 %v285
    %384 = vmatpush1.msra.mxu0 %v284
    %385 = vmatprep.subr.mxu0 %v287
    %386 = vmatpush1.msra.mxu0 %v286
    %387 = vmatprep.subr.mxu0 %v289
    %388 = vmatpush1.msra.mxu0 %v288
    %389 = vmatprep.subr.mxu0 %v291
    %390 = vmatpush1.msra.mxu0 %v290
    %391 = vmatprep.subr.mxu0 %v293
    %392 = vmatpush1.msra.mxu0 %v292
    %393 = vmatprep.subr.mxu0 %v295
    %394 = vmatpush1.msra.mxu0 %v294
    %395 = vmatprep.subr.mxu0 %v297
    %396 = vmatpush1.msra.mxu0 %v296
    %397 = vmatprep.subr.mxu0 %v299
    %398 = vmatpush1.msra.mxu0 %v298
    %399 = vmatprep.subr.mxu0 %v301
    %400 = vmatpush1.msra.mxu0 %v300
    %401 = vmatprep.subr.mxu0 %v303
    %402 = vmatpush1.msra.mxu0 %v302
    %403 = vmatprep.mubr.f32.mxu0 %v168
    %404 = vmatmul.mubr.f32.gmra.mrb[0].mxu0 %v166
    %v405 = vpop.f32.mrb[0].mxu0
    %v406 = vadd.f32 %v321, %v405
    %v407 = vpop.f32.mrb[0].mxu0
    %v408 = vadd.f32 %v325, %v407
    %409 = vdwg.mxu0
    %410 = vmatprep.subr.mxu0 %v305
    %411 = vmatpush1.msra.mxu0 %v304
    %412 = vmatprep.subr.mxu0 %v307
    %413 = vmatpush1.msra.mxu0 %v306
    %414 = vmatprep.subr.mxu0 %v309
    %415 = vmatpush1.msra.mxu0 %v308
    %416 = vmatprep.subr.mxu0 %v311
    %417 = vmatpush1.msra.mxu0 %v310
    %418 = vmatprep.subr.mxu0 %v313
    %419 = vmatpush1.msra.mxu0 %v312
    %420 = vmatprep.subr.mxu0 %v337
    %421 = vmatpush1.msra.mxu0 %v334
    %422 = vmatprep.subr.mxu0 0.0
    %423 = vmatpush1.msra.mxu0 0.0
    %424 = vmatprep.subr.mxu0 0.0
    %425 = vmatpush1.msra.mxu0 0.0
    %426 = vmatprep.subr.mxu0 0.0
    %427 = vmatpush1.msra.mxu0 0.0
    %428 = vmatprep.subr.mxu0 0.0
    %429 = vmatpush1.msra.mxu0 0.0
    %430 = vmatprep.subr.mxu0 0.0
    %431 = vmatpush1.msra.mxu0 0.0
    %432 = vmatprep.subr.mxu0 0.0
    %433 = vmatpush1.msra.mxu0 0.0
    %434 = vmatprep.subr.mxu0 0.0
    %435 = vmatpush1.msra.mxu0 0.0
    %436 = vmatprep.subr.mxu0 0.0
    %437 = vmatpush1.msra.mxu0 0.0
    %438 = vmatprep.subr.mxu0 0.0
    %439 = vmatpush1.msra.mxu0 0.0
    %440 = vmatprep.subr.mxu0 0.0
    %441 = vmatpush1.msra.mxu0 0.0
    %442 = vmatprep.subr.mxu0 0.0
    %443 = vmatpush1.msra.mxu0 0.0
    %444 = vmatprep.subr.mxu0 0.0
    %445 = vmatpush1.msra.mxu0 0.0
    %446 = vmatprep.subr.mxu0 0.0
    %447 = vmatpush1.msra.mxu0 0.0
    %448 = vmatprep.subr.mxu0 0.0
    %449 = vmatpush1.msra.mxu0 0.0
    %450 = vmatprep.subr.mxu0 0.0
    %451 = vmatpush1.msra.mxu0 0.0
    %452 = vmatprep.subr.mxu0 0.0
    %453 = vmatpush1.msra.mxu0 0.0
    %454 = vmatprep.subr.mxu0 0.0
    %455 = vmatpush1.msra.mxu0 0.0
    %456 = vmatprep.subr.mxu0 0.0
    %457 = vmatpush1.msra.mxu0 0.0
    %458 = vmatprep.subr.mxu0 0.0
    %459 = vmatpush1.msra.mxu0 0.0
    %460 = vmatprep.subr.mxu0 0.0
    %461 = vmatpush1.msra.mxu0 0.0
    %462 = vmatprep.subr.mxu0 0.0
    %463 = vmatpush1.msra.mxu0 0.0
    %464 = vmatprep.subr.mxu0 0.0
    %465 = vmatpush1.msra.mxu0 0.0
    %466 = vmatprep.subr.mxu0 0.0
    %467 = vmatpush1.msra.mxu0 0.0
    %468 = vmatprep.subr.mxu0 0.0
    %469 = vmatpush1.msra.mxu0 0.0
    %470 = vmatprep.subr.mxu0 0.0
    %471 = vmatpush1.msra.mxu0 0.0
    %472 = vmatprep.subr.mxu0 0.0
    %473 = vmatpush1.msra.mxu0 0.0
    %474 = vmatprep.mubr.f32.mxu0 0.0
    %475 = vmatmul.mubr.f32.gmra.mrb[0].mxu0 %v330
    %v476 = vpop.f32.mrb[0].mxu0
    %v477 = vadd.f32 %v406, %v476
    %v478 = vpop.f32.mrb[0].mxu0
    %v479 = vadd.f32 %v408, %v478
    %480 = vdwg.mxu0
    %v481 = vmax.f32 %v477, 0.0
    %v482 = vmax.f32 %v479, 0.0
    %v483 = vld [vmem:[%s4] sm:$0xff]
    %v484 = vld [vmem:[%s4 + $0x8] sm:$0xff]
    %v485 = vld [vmem:[%s4 + $0x10] sm:$0xff]
    %v486 = vld [vmem:[%s4 + $0x18] sm:$0xff]
    %v487 = vld [vmem:[%s4 + $0x20] sm:$0xff]
    %v488 = vld [vmem:[%s4 + $0x28] sm:$0xff]
    %v489 = vld [vmem:[%s4 + $0x30] sm:$0xff]
    %v490 = vld [vmem:[%s4 + $0x38] sm:$0xff]
    %v491 = vld [vmem:[%s4 + $0x40] sm:$0xff]
    %v492 = vld [vmem:[%s4 + $0x48] sm:$0xff]
    %v493 = vld [vmem:[%s4 + $0x50] sm:$0xff]
    %v494 = vld [vmem:[%s4 + $0x58] sm:$0xff]
    %v495 = vld [vmem:[%s4 + $0x60] sm:$0xff]
    %v496 = vld [vmem:[%s4 + $0x68] sm:$0xff]
    %v497 = vld [vmem:[%s4 + $0x70] sm:$0xff]
    %v498 = vld [vmem:[%s4 + $0x78] sm:$0xff]
    %v499 = vld [vmem:[%s4 + $0x80] sm:$0xff]
    %v500 = vld [vmem:[%s4 + $0x88] sm:$0xff]
    %v501 = vld [vmem:[%s4 + $0x90] sm:$0xff]
    %v502 = vld [vmem:[%s4 + $0x98] sm:$0xff]
    %v503 = vld [vmem:[%s4 + $0xa0] sm:$0xff]
    %v504 = vld [vmem:[%s4 + $0xa8] sm:$0xff]
    %v505 = vld [vmem:[%s4 + $0xb0] sm:$0xff]
    %v506 = vld [vmem:[%s4 + $0xb8] sm:$0xff]
    %v507 = vld [vmem:[%s4 + $0xc0] sm:$0xff]
    %v508 = vld [vmem:[%s4 + $0xc8] sm:$0xff]
    %v509 = vld [vmem:[%s4 + $0xd0] sm:$0xff]
    %v510 = vld [vmem:[%s4 + $0xd8] sm:$0xff]
    %v511 = vld [vmem:[%s4 + $0xe0] sm:$0xff]
    %v512 = vld [vmem:[%s4 + $0xe8] sm:$0xff]
    %v513 = vld [vmem:[%s4 + $0xf0] sm:$0xff]
    %v514 = vld [vmem:[%s4 + $0xf8] sm:$0xff]
    %v515 = vld [vmem:[%s4 + $0x100] sm:$0xff]
    %v516 = vld [vmem:[%s4 + $0x108] sm:$0xff]
    %v517 = vld [vmem:[%s4 + $0x110] sm:$0xff]
    %v518 = vld [vmem:[%s4 + $0x118] sm:$0xff]
    %v519 = vld [vmem:[%s4 + $0x120] sm:$0x3f]
    %v520 = vld [vmem:[%s4 + $0x128] sm:$0x3f]
    %v521 = vld [vmem:[%s5] sm:$0x3]
    %v523 = vlaneseq
    %v524 = vshrl.u32 %v523, 7
    %v525 = vsub.s32 0, %v524
    %v526 = vrot.slane %v521, %v525
    %v527 = vlaneseq
    %v528 = vshrl.u32 %v527, 7
    %v529 = vsub.s32 1, %v528
    %v530 = vrot.slane %v521, %v529
    %vm533 = vcmask 179200
    %v535 = vsel %vm533, %v482, 0
    %vm537 = vcmask 1045504
    %v539 = vsel %vm537, %v519, 0
    %v542 = vsel %vm537, %v520, 0
    %544 = vmatprep.subr.mxu0 %v484
    %545 = vmatpush1.msra.mxu0 %v483
    %546 = vmatprep.subr.mxu0 %v486
    %547 = vmatpush1.msra.mxu0 %v485
    %548 = vmatprep.subr.mxu0 %v488
    %549 = vmatpush1.msra.mxu0 %v487
    %550 = vmatprep.subr.mxu0 %v490
    %551 = vmatpush1.msra.mxu0 %v489
    %552 = vmatprep.subr.mxu0 %v492
    %553 = vmatpush1.msra.mxu0 %v491
    %554 = vmatprep.subr.mxu0 %v494
    %555 = vmatpush1.msra.mxu0 %v493
    %556 = vmatprep.subr.mxu0 %v496
    %557 = vmatpush1.msra.mxu0 %v495
    %558 = vmatprep.subr.mxu0 %v498
    %559 = vmatpush1.msra.mxu0 %v497
    %560 = vmatprep.subr.mxu0 %v500
    %561 = vmatpush1.msra.mxu0 %v499
    %562 = vmatprep.subr.mxu0 %v502
    %563 = vmatpush1.msra.mxu0 %v501
    %564 = vmatprep.subr.mxu0 %v504
    %565 = vmatpush1.msra.mxu0 %v503
    %566 = vmatprep.subr.mxu0 %v506
    %567 = vmatpush1.msra.mxu0 %v505
    %568 = vmatprep.subr.mxu0 %v508
    %569 = vmatpush1.msra.mxu0 %v507
    %570 = vmatprep.subr.mxu0 %v510
    %571 = vmatpush1.msra.mxu0 %v509
    %572 = vmatprep.subr.mxu0 %v512
    %573 = vmatpush1.msra.mxu0 %v511
    %574 = vmatprep.subr.mxu0 %v514
    %575 = vmatpush1.msra.mxu0 %v513
    %576 = vmatprep.subr.mxu0 %v516
    %577 = vmatpush1.msra.mxu0 %v515
    %578 = vmatprep.subr.mxu0 %v518
    %579 = vmatpush1.msra.mxu0 %v517
    %580 = vmatprep.subr.mxu0 %v542
    %581 = vmatpush1.msra.mxu0 %v539
    %582 = vmatprep.subr.mxu0 0.0
    %583 = vmatpush1.msra.mxu0 0.0
    %584 = vmatprep.subr.mxu0 0.0
    %585 = vmatpush1.msra.mxu0 0.0
    %586 = vmatprep.subr.mxu0 0.0
    %587 = vmatpush1.msra.mxu0 0.0
    %588 = vmatprep.subr.mxu0 0.0
    %589 = vmatpush1.msra.mxu0 0.0
    %590 = vmatprep.subr.mxu0 0.0
    %591 = vmatpush1.msra.mxu0 0.0
    %592 = vmatprep.subr.mxu0 0.0
    %593 = vmatpush1.msra.mxu0 0.0
    %594 = vmatprep.subr.mxu0 0.0
    %595 = vmatpush1.msra.mxu0 0.0
    %596 = vmatprep.subr.mxu0 0.0
    %597 = vmatpush1.msra.mxu0 0.0
    %598 = vmatprep.subr.mxu0 0.0
    %599 = vmatpush1.msra.mxu0 0.0
    %600 = vmatprep.subr.mxu0 0.0
    %601 = vmatpush1.msra.mxu0 0.0
    %602 = vmatprep.subr.mxu0 0.0
    %603 = vmatpush1.msra.mxu0 0.0
    %604 = vmatprep.subr.mxu0 0.0
    %605 = vmatpush1.msra.mxu0 0.0
    %606 = vmatprep.subr.mxu0 0.0
    %607 = vmatpush1.msra.mxu0 0.0
    %608 = vmatprep.mubr.f32.mxu0 %v535
    %609 = vmatmul.mubr.f32.gmra.mrb[0].mxu0 %v481
    %v610 = vpop.f32.mrb[0].mxu0
    %v611 = vadd.f32 %v526, %v610
    %v612 = vpop.f32.mrb[0].mxu0
    %v613 = vadd.f32 %v530, %v612
    %614 = vdwg.mxu0
    %v615 = vmax.f32 %v611, 0.0
    %v616 = vmax.f32 %v613, 0.0
    %v617 = vld [vmem:[%s6] sm:$0x3]
    %v619 = vlaneseq
    %v620 = vshrl.u32 %v619, 7
    %v621 = vsub.s32 0, %v620
    %v622 = vrot.slane %v617, %v621
    %v623 = vlaneseq
    %v624 = vshrl.u32 %v623, 7
    %v625 = vsub.s32 1, %v624
    %v626 = vrot.slane %v617, %v625
    %v629 = vmul.f32 %v615, %v622
    %v630 = vmul.f32 %v616, %v626
    %v631 = vsel %vm533, %v630, 0.0
    %v632 = vadd.f32 %v629, %v631
    %633 = vadd.xlane.f32.xlu0 %v632
    %v634 = vpop.xlane.xlu0 %633
    %v635 = vld [vmem:[#allocation2] sm:$0x1]
    %637 = vset.pattern.permute.xlu0 0
    %638 = vperm.xlu0 %637, %v635
    %v639 = vpop.permute.xlu0 %638
    %v641 = vlaneseq
    %v642 = vshrl.u32 %v641, 7
    %v643 = vsub.s32 0, %v642
    %v644 = vrot.slane %v639, %v643
    %v645 = vadd.f32 %v634, %v644
    %v647 = vlaneseq
    %v648 = vshrl.u32 %v647, 7
    %v649 = vsub.s32 %v34, %v648
    %v650 = vrot.slane %v645, %v649
    %vm652 = vcmask 57344
    %653 = vst.msk [vmem:[#allocation3] sm:$0x1] %vm652, %v650
    // Predicated region
    $region34: #{tpu_custom_call.1} parent=1 // pred_check
      _
    $region35: #{tpu_custom_call.1} parent=1 // pred_check_branch
      %655 = sbr.rel (0) target = $region37
    $region36: #{tpu_custom_call.1} parent=1 // pred_region
      %s657 = ssub.s32 16, 16
      %658 = vsyncadd [#allocation4], %s657
      %s660 = sshll.u32 [#allocation3], 4
      %s661 = int_to_ptr.vmem [resolvable:$true] %s660
      %663 = dma.vmem_to_hbm [thread:$0]  %s661, 16, %s8, [#allocation4]
    $region37: #{tpu_custom_call.1} parent=1 // pred_fallthru
      _
    // Predicated region
    $region38: #{tpu_custom_call.1} parent=1 // pred_check
      _
    $region39: #{tpu_custom_call.1} parent=1 // pred_check_branch
      %665 = sbr.rel (0) target = $region41
    $region40: #{tpu_custom_call.1} parent=1 // pred_region
      %666 = dma.done [#allocation4], 16
    $region41: #{tpu_custom_call.1} parent=1 // pred_fallthru
      _
    %667 = vsyncpa [#allocation4], 1

</llo_original>
